<compile_context>
chip_gen: v5e
topology: v5e:2x2
jax: 0.10.0
libtpu: 0.0.40
codegen_flags: <defaults>
</compile_context>

<pallas_src>
import functools

import jax
import jax.numpy as jnp
from jax import lax
from jax.experimental import pallas as pl
from jax.experimental.pallas import tpu as pltpu

_LANE = 128
_SUBLANE = 8
# Conservative budget for the double-buffered tiles: fits v7x (64 MiB physical
# per TC) with headroom; trivially safe on v5e/v6e (128 MiB physical).
_TILE_VMEM_BUDGET = 24 << 20
_VMEM_LIMIT_BYTES = 40 << 20


def _round_up(x: int, m: int) -> int:
    return ((x + m - 1) // m) * m


def _tile_vmem_bytes(tm: int, td: int, kblk: int, in_bytes: int, out_bytes: int) -> int:
    x_blk = tm * kblk * in_bytes       # activation tile  (double buffered)
    w_blk = kblk * td * in_bytes       # weight tile      (double buffered)
    o_blk = tm * td * out_bytes        # output tile      (double buffered)
    acc = tm * td * 4                  # f32 matmul result / accumulator
    return 2 * (x_blk + w_blk + o_blk) + acc


def _choose_tiles(N: int, K: int, d_pad: int, in_bytes: int, out_bytes: int):
    """Return (tm, td, tk). tk is None when the whole K fits in one block."""
    td = min(d_pad, 512)               # lane-dense, feeds v6e's 2x256^2 MXU
    tm_cap = _round_up(N, _SUBLANE)

    # Preferred path: keep the full reduction dim in a single block.
    for cand in (4096, 2048, 1024, 512, 256):
        tm = min(cand, tm_cap)
        if _tile_vmem_bytes(tm, td, K, in_bytes, out_bytes) <= _TILE_VMEM_BUDGET:
            # Prefer >= 2 row tiles so the parallel axis can shard across
            # v7x's two TensorCores (one extra ~0.35 us step is negligible).
            if pl.cdiv(N, tm) < 2 and N >= 2 * _SUBLANE:
                tm = _round_up(pl.cdiv(N, 2), _SUBLANE)
            return tm, td, None

    # Huge K: add a K-reduction grid axis with an f32 VMEM accumulator so the
    # row tile can stay MXU-friendly instead of collapsing to tiny tiles.
    tk = 512
    tm = 256
    while tm > _SUBLANE and _tile_vmem_bytes(tm, td, tk, in_bytes, out_bytes) > _TILE_VMEM_BUDGET:
        tm = max(_SUBLANE, tm // 2)
    tm = min(tm, tm_cap)
    if pl.cdiv(N, tm) < 2 and N >= 2 * _SUBLANE:
        tm = _round_up(pl.cdiv(N, 2), _SUBLANE)
    return tm, td, tk


def _patch_embed_kernel(x_ref, w_ref, b_ref, o_ref):
    # x_ref: (tm, K) bf16, w_ref: (K, td) bf16, b_ref: (1, td) f32, o_ref: (tm, td)
    acc = jnp.dot(x_ref[...], w_ref[...], preferred_element_type=jnp.float32)
    o_ref[...] = (acc + b_ref[...]).astype(o_ref.dtype)


def _patch_embed_kernel_ktiled(x_ref, w_ref, b_ref, o_ref, acc_ref):
    # K-reduction variant: grid axis 2 iterates K blocks, f32 accumulator scratch.
    k = pl.program_id(2)

    @pl.when(k == 0)
    def _():
        acc_ref[...] = jnp.zeros_like(acc_ref)

    acc_ref[...] += jnp.dot(x_ref[...], w_ref[...], preferred_element_type=jnp.float32)

    @pl.when(k == pl.num_programs(2) - 1)
    def _():
        o_ref[...] = (acc_ref[...] + b_ref[...]).astype(o_ref.dtype)


@functools.partial(jax.jit, static_argnames=("patch_size", "stride"))
def flexi_patch_embed_3d(x, weight, bias, *, patch_size, stride):
    """FlexiPatchEmbed3d.forward with patch_size=None, training=False, norm=Identity."""
    B, C, T, H, W = x.shape
    pt, ph, pw = patch_size
    st, sh, sw = stride
    assert (pt, ph, pw) == (st, sh, sw), "kernel implements non-overlapping patchify"
    # TODO(synk): overlapping stride (stride != patch_size) needs a strided
    # im2col gather; the module's default config uses stride == patch_size.

    # Conv3d VALID semantics: crop any trailing remainder before patchifying.
    To = (T - pt) // st + 1
    Ho = (H - ph) // sh + 1
    Wo = (W - pw) // sw + 1
    x = x[:, :, : To * pt, : Ho * ph, : Wo * pw]

    D = weight.shape[0]
    K = C * pt * ph * pw
    N = B * To * Ho * Wo

    compute_dtype = jnp.bfloat16
    out_dtype = x.dtype
    in_bytes = jnp.dtype(compute_dtype).itemsize
    out_bytes = jnp.dtype(out_dtype).itemsize

    # Lane-dense embed dim: pad D to a multiple of 128 so output stores are
    # full-lane unmasked vst instead of vst.msk partial stores.
    d_pad = _round_up(D, _LANE)

    # im2col view (channel-major patch features, matching torch Conv3d weight
    # flattening). allow_input_fusion lets XLA fuse this producer chain into
    # the Pallas input DMA instead of a full extra HBM round trip.
    xp = x.reshape(B, C, To, pt, Ho, ph, Wo, pw)
    xp = xp.transpose(0, 2, 4, 6, 1, 3, 5, 7)            # (B,To,Ho,Wo,C,pt,ph,pw)
    xmat = xp.reshape(N, K).astype(compute_dtype)        # (N, K)

    wmat = weight.reshape(D, K).T.astype(compute_dtype)  # (K, D)
    wmat = jnp.pad(wmat, ((0, 0), (0, d_pad - D)))       # (K, d_pad)
    bmat = jnp.pad(bias.astype(jnp.float32).reshape(1, D), ((0, 0), (0, d_pad - D)))

    tm, td, tk = _choose_tiles(N, K, d_pad, in_bytes, out_bytes)

    cost = pl.CostEstimate(
        flops=2 * N * K * d_pad,
        transcendentals=0,
        bytes_accessed=(N * K * in_bytes + K * d_pad * in_bytes
                        + d_pad * 4 + N * d_pad * out_bytes),
    )

    if tk is None:
        grid = (pl.cdiv(N, tm), pl.cdiv(d_pad, td))
        out = pl.pallas_call(
            _patch_embed_kernel,
            out_shape=jax.ShapeDtypeStruct((N, d_pad), out_dtype),
            grid=grid,
            in_specs=[
                pl.BlockSpec((tm, K), lambda i, j: (i, 0)),
                pl.BlockSpec((K, td), lambda i, j: (0, j)),
                pl.BlockSpec((1, td), lambda i, j: (0, j)),
            ],
            out_specs=pl.BlockSpec((tm, td), lambda i, j: (i, j)),
            compiler_params=pltpu.CompilerParams(
                dimension_semantics=("parallel", "parallel"),
                vmem_limit_bytes=_VMEM_LIMIT_BYTES,
                allow_input_fusion=[True, False, False],
            ),
            cost_estimate=cost,
        )(xmat, wmat, bmat)
    else:
        # Large-K path: zero-pad K to a multiple of tk (zeros are exact in the
        # accumulation) and iterate a reduction grid axis with an f32 scratch.
        k_pad = _round_up(K, tk)
        if k_pad != K:
            xmat = jnp.pad(xmat, ((0, 0), (0, k_pad - K)))
            wmat = jnp.pad(wmat, ((0, k_pad - K), (0, 0)))
        grid = (pl.cdiv(N, tm), pl.cdiv(d_pad, td), k_pad // tk)
        out = pl.pallas_call(
            _patch_embed_kernel_ktiled,
            out_shape=jax.ShapeDtypeStruct((N, d_pad), out_dtype),
            grid=grid,
            in_specs=[
                pl.BlockSpec((tm, tk), lambda i, j, k: (i, k)),
                pl.BlockSpec((tk, td), lambda i, j, k: (k, j)),
                pl.BlockSpec((1, td), lambda i, j, k: (0, j)),
            ],
            out_specs=pl.BlockSpec((tm, td), lambda i, j, k: (i, j)),
            scratch_shapes=[pltpu.VMEM((tm, td), jnp.float32)],
            compiler_params=pltpu.CompilerParams(
                dimension_semantics=("parallel", "parallel", "arbitrary"),
                vmem_limit_bytes=_VMEM_LIMIT_BYTES,
                allow_input_fusion=[True, False, False],
            ),
            cost_estimate=cost,
        )(xmat, wmat, bmat)

    # norm is Identity (norm_layer=None); the two permutes in forward cancel.
    out = out[:, :D].reshape(B, To, Ho, Wo, D)
    return out.transpose(0, 4, 1, 2, 3)                   # (B, d_embed, T', H', W')


def _reference_conv3d(x, weight, bias, stride):
    y = lax.conv_general_dilated(
        x, weight, window_strides=stride, padding="VALID",
        dimension_numbers=("NCDHW", "OIDHW", "NCDHW"),
    )
    return y + bias.reshape(1, -1, 1, 1, 1)


if __name__ == "__main__":
    # Module hyper-parameters (small, consistent with FlexiPatchEmbed3d):
    input_size = (8, 16, 16)
    patch_size = (2, 4, 4)
    stride = (2, 4, 4)
    channels = 4
    d_embed = 32
    batch = 2

    key = jax.random.PRNGKey(0)
    kx, kw, kb = jax.random.split(key, 3)

    x = jax.random.normal(kx, (batch, channels) + input_size, dtype=jnp.float32)
    # Deterministic synthetic Conv3d parameters (shapes from nn.Conv3d init):
    weight = jax.random.normal(
        kw, (d_embed, channels) + patch_size, dtype=jnp.float32
    ) * 0.02
    bias = jax.random.normal(kb, (d_embed,), dtype=jnp.float32) * 0.02

    out = flexi_patch_embed_3d(x, weight, bias, patch_size=patch_size, stride=stride)
    out = jax.block_until_ready(out)

    # Reference: f32 conv3d on bf16-rounded inputs (the kernel feeds the MXU
    # bf16 operands with f32 accumulation and an f32 bias epilogue).
    x_r = x.astype(jnp.bfloat16).astype(jnp.float32)
    w_r = weight.astype(jnp.bfloat16).astype(jnp.float32)
    ref = _reference_conv3d(x_r, w_r, bias, stride)
    ref = jax.block_until_ready(ref)

    expected_shape = (
        batch, d_embed,
        input_size[0] // stride[0],
        input_size[1] // stride[1],
        input_size[2] // stride[2],
    )
    assert out.shape == ref.shape == expected_shape, (out.shape, ref.shape)
    assert jnp.allclose(out, ref, rtol=1e-2, atol=1e-2), float(
        jnp.max(jnp.abs(out - ref))
    )

    print("KERNEL_OK")
</pallas_src>

<mosaic_0001>
module attributes {stable_mosaic.version = 11 : i64} {
  func.func @_patch_embed_kernel(%arg0: i32, %arg1: i32, %arg2: memref<64x128xbf16, #tpu.memory_space<vmem>>, %arg3: memref<128x128xbf16, #tpu.memory_space<vmem>>, %arg4: memref<1x128xf32, #tpu.memory_space<vmem>>, %arg5: memref<64x128xf32, #tpu.memory_space<vmem>>) attributes {dimension_semantics = [#tpu.dimension_semantics<parallel>, #tpu.dimension_semantics<parallel>], iteration_bounds = array<i64: 2, 1>, scalar_prefetch = 0 : i64, scratch_operands = 0 : i64, tpu.core_type = #tpu.core_type<tc>, window_params = [{transform_indices = @transform_0, window_bounds = array<i64: 64, 128>}, {transform_indices = @transform_1, window_bounds = array<i64: 128, 128>}, {transform_indices = @transform_2, window_bounds = array<i64: 1, 128>}, {transform_indices = @transform_3, window_bounds = array<i64: 64, 128>}]} {
    %c0 = arith.constant 0 : index
    %c0_0 = arith.constant 0 : index
    %0 = vector.load %arg2[%c0, %c0_0] : memref<64x128xbf16, #tpu.memory_space<vmem>>, vector<64x128xbf16>
    %c0_1 = arith.constant 0 : index
    %c0_2 = arith.constant 0 : index
    %1 = vector.load %arg3[%c0_1, %c0_2] : memref<128x128xbf16, #tpu.memory_space<vmem>>, vector<128x128xbf16>
    %cst = arith.constant dense<0.000000e+00> : vector<64x128xf32>
    %2 = tpu.matmul %0, %1, %cst {dimension_numbers = #tpu.dot_dimension_numbers<[1], [0], [0], [1], [0, 0, 1, 1], [], []>} : vector<64x128xbf16>, vector<128x128xbf16>, vector<64x128xf32> -> vector<64x128xf32>
    %c0_3 = arith.constant 0 : index
    %c0_4 = arith.constant 0 : index
    %3 = vector.load %arg4[%c0_3, %c0_4] : memref<1x128xf32, #tpu.memory_space<vmem>>, vector<1x128xf32>
    %4 = vector.broadcast %3 : vector<1x128xf32> to vector<64x128xf32>
    %5 = arith.addf %2, %4 : vector<64x128xf32>
    %c0_5 = arith.constant 0 : index
    %c0_6 = arith.constant 0 : index
    %6 = vector.load %arg5[%c0_5, %c0_6] : memref<64x128xf32, #tpu.memory_space<vmem>>, vector<64x128xf32>
    tpu.vector_store %arg5[%c0_5, %c0_6], %5 {strides = array<i32>} : memref<64x128xf32, #tpu.memory_space<vmem>>, vector<64x128xf32>,
    return
  }
  func.func @transform_0(%arg0: i32, %arg1: i32) -> (i32, i32) {
    %c0_i32 = arith.constant 0 : i32
    %c0_i32_0 = arith.constant 0 : i32
    return %arg0, %c0_i32 : i32, i32
  }
  func.func @transform_1(%arg0: i32, %arg1: i32) -> (i32, i32) {
    %c0_i32 = arith.constant 0 : i32
    %c0_i32_0 = arith.constant 0 : i32
    return %c0_i32, %arg1 : i32, i32
  }
  func.func @transform_2(%arg0: i32, %arg1: i32) -> (i32, i32) {
    %c0_i32 = arith.constant 0 : i32
    %c0_i32_0 = arith.constant 0 : i32
    return %c0_i32, %arg1 : i32, i32
  }
  func.func @transform_3(%arg0: i32, %arg1: i32) -> (i32, i32) {
    %c0_i32 = arith.constant 0 : i32
    return %arg0, %arg1 : i32, i32
  }
}

</mosaic_0001>

<llo_original>
// kernel: flexi_patch_embed_3d.1
$region0: #{flexi_patch_embed_3d.1}
  #allocation0 [shape = 'u32[]', space=smem, size = 0x4, offset = 0x4, fixed_abs, tag = 'smem constant byte address 0x4 - core index']
  #allocation1 [shape = 'u32[72,128]{1,0:T(1,128)}', space=vmem, size = 0x9000, scoped, tag = 'internal scratch']
  %s0 = inlined_call_operand.vmem [shape: bf16[128,128], index: 0, kind: input, shape index: {}]
  %s1 = inlined_call_operand.vmem [shape: bf16[128,128], index: 1, kind: input, shape index: {}]
  %s2 = inlined_call_operand.vmem [shape: f32[1,128], index: 2, kind: input, shape index: {}]
  %s3 = inlined_call_operand.hbm [shape: f32[128,128], index: 3, kind: output, shape index: {}]
  %s4 = sld [smem:[#allocation0]]
  $region45: #{flexi_patch_embed_3d.1} parent=0
    _
  %s6 = ssub.s32 1, %s4
  %s7 = scalar_select 0, %s6, %s4
  $region1: #{flexi_patch_embed_3d.1} parent=0
    #allocation2 [shape = 'u8[65536]{0}', space=vmem, size = 0x10000, scoped, tag = 'output window, operand 0']
    #allocation3 [shape = 's32[2]{0}', space=sflag, size = 0x8, scoped, tag = 'scoped memory for flexi_patch_embed_3d.1']
    %8 = vsyncpa [#allocation3], 0
    %s9 = scalar_lea.sflag [#allocation3], 1
    %10 = vsyncpa %s9, 0
    loop: start=0, step=1, limit=4
    $region2: #{flexi_patch_embed_3d.1} parent=1 // loop_pre_header
      _
    $region3: #{flexi_patch_embed_3d.1} parent=1 // loop_header
      %s12 = sphi 0, %s16
      %p13 = scmp.ge.s32.totalorder %s12, 4
      %s19 = sphi 0, %s31
      %s20 = sphi 0, %s27
      %s21 = sphi 0, %s19
      %s22 = sphi 0, %s20
      %s23 = sphi 0, %s21
      %s24 = sphi 0, %s22
      %s34 = sphi 0, %s36
      %s37 = sphi 0, %s34
      %s38 = sphi 0, %s37
      %s54 = sphi 0, %s38
      %s60 = sphi 0, %s62
      %s63 = sphi 0, %s60
      %s64 = sphi 0, %s63
      %s80 = sphi 0, %s64
      %s86 = sphi 0, %s88
      %s89 = sphi 0, %s86
      %s90 = sphi 0, %s89
      %s106 = sphi 0, %s90
      %s114 = sphi 0, %s116
      %s117 = sphi 0, %s114
      %s118 = sphi 0, %s117
      %s134 = sphi 0, %s118
    $region4: #{flexi_patch_embed_3d.1} parent=1 // loop_header_branch
      %15 = sbr.rel (%p13) target = $region8
    $region5: #{flexi_patch_embed_3d.1} parent=1 // loop_body
      %s17 = ssub.s32 %s12, 1
      %s18 = ssub.s32 %s12, 2
      %s25 = sadd.s32 1, %s20
      %p26 = scmp.ge.s32.totalorder %s25, 1
      %s27 = scalar_select %p26, 0, %s25
      %s28 = sadd.s32 1, %s19
      %s29 = scalar_select %p26, %s28, %s19
      %p30 = scmp.ge.s32.totalorder %s29, 2
      %s31 = scalar_select %p30, 0, %s29
      %s32 = ssub.s32 %s19, %s31
      %p33 = scmp.eq.s32.totalorder %s32, 0
      %s35 = sadd.s32 %s34, 1
      %s36 = scalar_select %p33, %s34, %s35
      %p39 = pneg %p33
      %p40 = scmp.eq.s32.totalorder %s12, 1
      %p41 = por %p39, %p40
      %p42 = scmp.ne.s32.totalorder %s34, %s37
      %p43 = scmp.eq.s32.totalorder %s12, 0
      %p44 = por %p42, %p43
      %p45 = scmp.ne.s32.totalorder %s34, %s37
      %p46 = scmp.eq.s32.totalorder %s17, 1
      %p47 = por %p45, %p46
      %p48 = scmp.ne.s32.totalorder %s37, %s38
      %p49 = scmp.eq.s32.totalorder %s17, 0
      %p50 = por %p48, %p49
      %p51 = scmp.ne.s32.totalorder %s37, %s38
      %p52 = scmp.eq.s32.totalorder %s18, 1
      %p53 = por %p51, %p52
      %p55 = scmp.ne.s32.totalorder %s38, %s54
      %p56 = scmp.eq.s32.totalorder %s18, 0
      %p57 = por %p55, %p56
      %s58 = ssub.s32 %s20, %s27
      %p59 = scmp.eq.s32.totalorder %s58, 0
      %s61 = sadd.s32 %s60, 1
      %s62 = scalar_select %p59, %s60, %s61
      %p65 = pneg %p59
      %p66 = scmp.eq.s32.totalorder %s12, 1
      %p67 = por %p65, %p66
      %p68 = scmp.ne.s32.totalorder %s60, %s63
      %p69 = scmp.eq.s32.totalorder %s12, 0
      %p70 = por %p68, %p69
      %p71 = scmp.ne.s32.totalorder %s60, %s63
      %p72 = scmp.eq.s32.totalorder %s17, 1
      %p73 = por %p71, %p72
      %p74 = scmp.ne.s32.totalorder %s63, %s64
      %p75 = scmp.eq.s32.totalorder %s17, 0
      %p76 = por %p74, %p75
      %p77 = scmp.ne.s32.totalorder %s63, %s64
      %p78 = scmp.eq.s32.totalorder %s18, 1
      %p79 = por %p77, %p78
      %p81 = scmp.ne.s32.totalorder %s64, %s80
      %p82 = scmp.eq.s32.totalorder %s18, 0
      %p83 = por %p81, %p82
      %s84 = ssub.s32 %s20, %s27
      %p85 = scmp.eq.s32.totalorder %s84, 0
      %s87 = sadd.s32 %s86, 1
      %s88 = scalar_select %p85, %s86, %s87
      %p91 = pneg %p85
      %p92 = scmp.eq.s32.totalorder %s12, 1
      %p93 = por %p91, %p92
      %p94 = scmp.ne.s32.totalorder %s86, %s89
      %p95 = scmp.eq.s32.totalorder %s12, 0
      %p96 = por %p94, %p95
      %p97 = scmp.ne.s32.totalorder %s86, %s89
      %p98 = scmp.eq.s32.totalorder %s17, 1
      %p99 = por %p97, %p98
      %p100 = scmp.ne.s32.totalorder %s89, %s90
      %p101 = scmp.eq.s32.totalorder %s17, 0
      %p102 = por %p100, %p101
      %p103 = scmp.ne.s32.totalorder %s89, %s90
      %p104 = scmp.eq.s32.totalorder %s18, 1
      %p105 = por %p103, %p104
      %p107 = scmp.ne.s32.totalorder %s90, %s106
      %p108 = scmp.eq.s32.totalorder %s18, 0
      %p109 = por %p107, %p108
      %s110 = ssub.s32 %s19, %s31
      %s111 = ssub.s32 %s20, %s27
      %s112 = sor.u32 %s110, %s111
      %p113 = scmp.eq.s32.totalorder %s112, 0
      %s115 = sadd.s32 %s114, 1
      %s116 = scalar_select %p113, %s114, %s115
      %p119 = pneg %p113
      %p120 = scmp.eq.s32.totalorder %s12, 1
      %p121 = por %p119, %p120
      %p122 = scmp.ne.s32.totalorder %s114, %s117
      %p123 = scmp.eq.s32.totalorder %s12, 0
      %p124 = por %p122, %p123
      %p125 = scmp.ne.s32.totalorder %s114, %s117
      %p126 = scmp.eq.s32.totalorder %s17, 1
      %p127 = por %p125, %p126
      %p128 = scmp.ne.s32.totalorder %s117, %s118
      %p129 = scmp.eq.s32.totalorder %s17, 0
      %p130 = por %p128, %p129
      %p131 = scmp.ne.s32.totalorder %s117, %s118
      %p132 = scmp.eq.s32.totalorder %s18, 1
      %p133 = por %p131, %p132
      %p135 = scmp.ne.s32.totalorder %s118, %s134
      %p136 = scmp.eq.s32.totalorder %s18, 0
      %p137 = por %p135, %p136
      %p138 = scmp.le.s32.totalorder 1, %s12
      %p139 = scmp.lt.s32.totalorder %s12, 3
      %p140 = pnand %p138, %p139
      %p141 = pneg %p140
      // Predicated region
      $region9: #{flexi_patch_embed_3d.1} parent=5 // pred_check
        _
      $region10: #{flexi_patch_embed_3d.1} parent=5 // pred_check_branch
        %143 = sbr.rel (%p140) target = $region12
      $region11: #{flexi_patch_embed_3d.1} parent=5 // pred_region
        %s144 = ssub.s32 %s12, 1
        // Predicated region
        $region13: #{flexi_patch_embed_3d.1} parent=11 // pred_check
          %p145 = pneg %p76
        $region14: #{flexi_patch_embed_3d.1} parent=11 // pred_check_branch
          %147 = sbr.rel (%p145) target = $region16
        $region15: #{flexi_patch_embed_3d.1} parent=11 // pred_region
          %p148 = scmp.lt.s32.totalorder %s22, 0
          %s149 = scalar_select %p148, %s22, 0
          %s150 = smul.addr %s149, 4
          %s151 = scalar_lea.vmem %s1, %s150
        $region16: #{flexi_patch_embed_3d.1} parent=11 // pred_fallthru
          _
        // Predicated region
        $region17: #{flexi_patch_embed_3d.1} parent=11 // pred_check
          %p152 = pneg %p102
        $region18: #{flexi_patch_embed_3d.1} parent=11 // pred_check_branch
          %154 = sbr.rel (%p152) target = $region20
        $region19: #{flexi_patch_embed_3d.1} parent=11 // pred_region
          %p155 = scmp.lt.s32.totalorder %s22, 0
          %s156 = scalar_select %p155, %s22, 0
          %s157 = scalar_lea.vmem %s2, %s156
        $region20: #{flexi_patch_embed_3d.1} parent=11 // pred_fallthru
          _
      $region12: #{flexi_patch_embed_3d.1} parent=5 // pred_fallthru
        _
      %p158 = scmp.lt.s32.totalorder %s12, 2
      // Predicated region
      $region21: #{flexi_patch_embed_3d.1} parent=5 // pred_check
        %p159 = pneg %p158
      $region22: #{flexi_patch_embed_3d.1} parent=5 // pred_check_branch
        %161 = sbr.rel (%p159) target = $region24
      $region23: #{flexi_patch_embed_3d.1} parent=5 // pred_region
        // Predicated region
        $region25: #{flexi_patch_embed_3d.1} parent=23 // pred_check
          %p162 = pneg %p44
        $region26: #{flexi_patch_embed_3d.1} parent=23 // pred_check_branch
          %164 = sbr.rel (%p162) target = $region28
        $region27: #{flexi_patch_embed_3d.1} parent=23 // pred_region
          %s165 = smul.u32 8, %s19
          %p166 = scmp.lt.s32.totalorder %s165, 15
          %s167 = scalar_select %p166, %s165, 15
          %s168 = smul.addr %s167, 4
          %s169 = scalar_lea.vmem %s0, %s168
          %s170 = smul.u32 8, %s19
        $region28: #{flexi_patch_embed_3d.1} parent=23 // pred_fallthru
          _
      $region24: #{flexi_patch_embed_3d.1} parent=5 // pred_fallthru
        _
      %p171 = scmp.le.s32.totalorder 1, %s12
      %p172 = scmp.lt.s32.totalorder %s12, 3
      %p173 = pnand %p171, %p172
      %p174 = pneg %p173
      // Predicated region
      $region29: #{flexi_patch_embed_3d.1} parent=5 // pred_check
        _
      $region30: #{flexi_patch_embed_3d.1} parent=5 // pred_check_branch
        %176 = sbr.rel (%p173) target = $region32
      $region31: #{flexi_patch_embed_3d.1} parent=5 // pred_region
        %s177 = ssub.s32 %s12, 1
        %s178 = smul.u32 8, %s21
        %p179 = scmp.lt.s32.totalorder %s178, 15
        %s180 = scalar_select %p179, %s178, 15
        %s181 = smul.addr %s180, 4
        %s182 = scalar_lea.vmem %s0, %s181
        %p183 = pneg %p50
        %p184 = pneg %p47
        %p185 = scmp.lt.s32.totalorder %s22, 0
        %s186 = scalar_select %p185, %s22, 0
        %s187 = smul.addr %s186, 4
        %s188 = scalar_lea.vmem %s1, %s187
        %p189 = pneg %p76
        %p190 = pneg %p73
        %p191 = scmp.lt.s32.totalorder %s22, 0
        %s192 = scalar_select %p191, %s22, 0
        %s193 = scalar_lea.vmem %s2, %s192
        %p194 = pneg %p102
        %p195 = pneg %p99
        %p196 = pneg %p130
        %p197 = pneg %p127
        %s198 = sand.u32 %s117, 1
        %s199 = scalar_lea.sflag [#allocation3], %s198
        %s200 = sand.u32 %s117, 1
        %s201 = smul.addr %s200, 64
        %s202 = scalar_lea.vmem [#allocation2], %s201
        %s203 = smul.u32 8, %s21
        %p204 = scmp.lt.s32.totalorder %s203, 15
        %s205 = scalar_select %p204, %s203, 15
        %s206 = smul.addr %s205, 4
        %s207 = scalar_lea.vmem %s0, %s206
        %s208 = smul.u32 8, %s21
        %p209 = scmp.lt.s32.totalorder %s22, 0
        %s210 = scalar_select %p209, %s22, 0
        %s211 = smul.addr %s210, 4
        %s212 = scalar_lea.vmem %s1, %s211
        %p213 = scmp.lt.s32.totalorder %s22, 0
        %s214 = scalar_select %p213, %s22, 0
        %s215 = scalar_lea.vmem %s2, %s214
        %s216 = smul.u32 8, %s21
        %v217 = vld [vmem:[%s207] sm:$0xf]
        %v218 = vld [vmem:[%s207 + $0x4] sm:$0xf]
        %v219 = vld [vmem:[%s207 + $0x8] sm:$0xf]
        %v220 = vld [vmem:[%s207 + $0xc] sm:$0xf]
        %v221 = vld [vmem:[%s207 + $0x10] sm:$0xf]
        %v222 = vld [vmem:[%s207 + $0x14] sm:$0xf]
        %v223 = vld [vmem:[%s207 + $0x18] sm:$0xf]
        %v224 = vld [vmem:[%s207 + $0x1c] sm:$0xf]
        %v225 = vld [vmem:[%s212] sm:$0xf]
        %v226 = vld [vmem:[%s212 + $0x4] sm:$0xf]
        %v227 = vld [vmem:[%s212 + $0x8] sm:$0xf]
        %v228 = vld [vmem:[%s212 + $0xc] sm:$0xf]
        %v229 = vld [vmem:[%s212 + $0x10] sm:$0xf]
        %v230 = vld [vmem:[%s212 + $0x14] sm:$0xf]
        %v231 = vld [vmem:[%s212 + $0x18] sm:$0xf]
        %v232 = vld [vmem:[%s212 + $0x1c] sm:$0xf]
        %v233 = vld [vmem:[%s212 + $0x20] sm:$0xf]
        %v234 = vld [vmem:[%s212 + $0x24] sm:$0xf]
        %v235 = vld [vmem:[%s212 + $0x28] sm:$0xf]
        %v236 = vld [vmem:[%s212 + $0x2c] sm:$0xf]
        %v237 = vld [vmem:[%s212 + $0x30] sm:$0xf]
        %v238 = vld [vmem:[%s212 + $0x34] sm:$0xf]
        %v239 = vld [vmem:[%s212 + $0x38] sm:$0xf]
        %v240 = vld [vmem:[%s212 + $0x3c] sm:$0xf]
        %v241 = vld [vmem:[%s215] sm:$0x1]
        %v243 = vperm.slane %v241, 0
        %v253 = vunpack.c.l.b16 %v217
        %v254 = vunpack.c.l.b16 %v218
        %v255 = vunpack.c.l.b16 %v219
        %v256 = vunpack.c.l.b16 %v220
        %v257 = vunpack.c.l.b16 %v221
        %v258 = vunpack.c.l.b16 %v222
        %v259 = vunpack.c.l.b16 %v223
        %v260 = vunpack.c.l.b16 %v224
        %v261 = vpack.c.b16 %v254, %v253
        %v262 = vpack.c.b16 %v256, %v255
        %v263 = vpack.c.b16 %v258, %v257
        %v264 = vpack.c.b16 %v260, %v259
        %v285 = vunpack.c.l.b16 %v225
        %v286 = vunpack.c.l.b16 %v226
        %v287 = vunpack.c.l.b16 %v227
        %v288 = vunpack.c.l.b16 %v228
        %v289 = vunpack.c.l.b16 %v229
        %v290 = vunpack.c.l.b16 %v230
        %v291 = vunpack.c.l.b16 %v231
        %v292 = vunpack.c.l.b16 %v232
        %v293 = vunpack.c.l.b16 %v233
        %v294 = vunpack.c.l.b16 %v234
        %v295 = vunpack.c.l.b16 %v235
        %v296 = vunpack.c.l.b16 %v236
        %v297 = vunpack.c.l.b16 %v237
        %v298 = vunpack.c.l.b16 %v238
        %v299 = vunpack.c.l.b16 %v239
        %v300 = vunpack.c.l.b16 %v240
        %v301 = vpack.c.b16 %v286, %v285
        %v302 = vpack.c.b16 %v288, %v287
        %v303 = vpack.c.b16 %v290, %v289
        %v304 = vpack.c.b16 %v292, %v291
        %v305 = vpack.c.b16 %v294, %v293
        %v306 = vpack.c.b16 %v296, %v295
        %v307 = vpack.c.b16 %v298, %v297
        %v308 = vpack.c.b16 %v300, %v299
        %317 = vmatpush.bf16.msra.mxu0 %v308
        %318 = vmatpush.bf16.msra.mxu0 %v307
        %319 = vmatpush.bf16.msra.mxu0 %v306
        %320 = vmatpush.bf16.msra.mxu0 %v305
        %321 = vmatpush.bf16.msra.mxu0 %v304
        %322 = vmatpush.bf16.msra.mxu0 %v303
        %323 = vmatpush.bf16.msra.mxu0 %v302
        %324 = vmatpush.bf16.msra.mxu0 %v301
        %325 = vmatmul.bf16.gmra.mxu0 %v261
        %v326 = vpop.f32.mrf.mxu0
        %v327 = vadd.f32 %v243, %v326
        %v328 = vpop.f32.mrf.mxu0
        %v329 = vadd.f32 %v243, %v328
        %330 = vmatmul.bf16.gmra.mxu0 %v262
        %v331 = vpop.f32.mrf.mxu0
        %v332 = vadd.f32 %v243, %v331
        %v333 = vpop.f32.mrf.mxu0
        %v334 = vadd.f32 %v243, %v333
        %335 = vmatmul.bf16.gmra.mxu0 %v263
        %v336 = vpop.f32.mrf.mxu0
        %v337 = vadd.f32 %v243, %v336
        %v338 = vpop.f32.mrf.mxu0
        %v339 = vadd.f32 %v243, %v338
        %340 = vmatmul.bf16.gmra.mxu0 %v264
        %v341 = vpop.f32.mrf.mxu0
        %v342 = vadd.f32 %v243, %v341
        %v343 = vpop.f32.mrf.mxu0
        %v344 = vadd.f32 %v243, %v343
        %345 = vdwg.mxu0
        %346 = vst [vmem:[%s202] sm:$0xff] %v327
        %347 = vst [vmem:[%s202 + $0x8] sm:$0xff] %v329
        %348 = vst [vmem:[%s202 + $0x10] sm:$0xff] %v332
        %349 = vst [vmem:[%s202 + $0x18] sm:$0xff] %v334
        %350 = vst [vmem:[%s202 + $0x20] sm:$0xff] %v337
        %351 = vst [vmem:[%s202 + $0x28] sm:$0xff] %v339
        %352 = vst [vmem:[%s202 + $0x30] sm:$0xff] %v342
        %353 = vst [vmem:[%s202 + $0x38] sm:$0xff] %v344
        %s354 = sand.u32 %s117, 1
        %s355 = scalar_lea.sflag [#allocation3], %s354
        %s356 = sand.u32 %s117, 1
        %s357 = smul.addr %s356, 64
        %s358 = scalar_lea.vmem [#allocation2], %s357
        // Predicated region
        $region33: #{flexi_patch_embed_3d.1} parent=31 // pred_check
          %p359 = pneg %p127
        $region34: #{flexi_patch_embed_3d.1} parent=31 // pred_check_branch
          %361 = sbr.rel (%p359) target = $region36
        $region35: #{flexi_patch_embed_3d.1} parent=31 // pred_region
          %s362 = smul.u32 8, %s21
          %364 = vsyncadd %s355, 0
          %s365 = sadd.s32 %s22, %s362
          %s366 = smul.addr %s365, 8
          %s367 = scalar_lea.hbm %s3, %s366
          %s368 = sshll.u32 %s358, 4
          %s369 = int_to_ptr.vmem [resolvable:$true] %s368
          %s370 = sshll.u32 %s367, 4
          %s371 = int_to_ptr.hbm [resolvable:$true] %s370
          %376 = dma.vmem_to_hbm [thread:$0]  %s369, 1024, %s371, %s355, 128, 128, 8
        $region36: #{flexi_patch_embed_3d.1} parent=31 // pred_fallthru
          _
      $region32: #{flexi_patch_embed_3d.1} parent=5 // pred_fallthru
        _
      %p377 = scmp.le.s32.totalorder 2, %s12
      // Predicated region
      $region37: #{flexi_patch_embed_3d.1} parent=5 // pred_check
        %p378 = pneg %p377
      $region38: #{flexi_patch_embed_3d.1} parent=5 // pred_check_branch
        %380 = sbr.rel (%p378) target = $region40
      $region39: #{flexi_patch_embed_3d.1} parent=5 // pred_region
        %s381 = ssub.s32 %s12, 2
        // Predicated region
        $region41: #{flexi_patch_embed_3d.1} parent=39 // pred_check
          %p382 = pneg %p133
        $region42: #{flexi_patch_embed_3d.1} parent=39 // pred_check_branch
          %384 = sbr.rel (%p382) target = $region44
        $region43: #{flexi_patch_embed_3d.1} parent=39 // pred_region
          %s385 = sand.u32 %s118, 1
          %s386 = scalar_lea.sflag [#allocation3], %s385
          %s387 = sand.u32 %s118, 1
          %s388 = smul.addr %s387, 64
          %s389 = scalar_lea.vmem [#allocation2], %s388
          %391 = dma.done %s386, 1024
        $region44: #{flexi_patch_embed_3d.1} parent=39 // pred_fallthru
          _
      $region40: #{flexi_patch_embed_3d.1} parent=5 // pred_fallthru
        _
    $region6: #{flexi_patch_embed_3d.1} parent=1 // loop_footer
      %s16 = sadd.s32 1, %s12
    $region7: #{flexi_patch_embed_3d.1} parent=1 // loop_footer_branch
      %11 = sbr.rel target = $region3
    $region8: #{flexi_patch_embed_3d.1} parent=1 // loop_exit
      _
    %392 = vsyncpa [#allocation3], 1
    %s393 = scalar_lea.sflag [#allocation3], 1
    %394 = vsyncpa %s393, 1

</llo_original>
